<compile_context>
chip_gen: v7x
topology: tpu7x:2x2x1
jax: 0.10.0
libtpu: 0.0.40
codegen_flags: <defaults>
</compile_context>

<pallas_src>
import math

import jax
import jax.numpy as jnp
from jax.experimental import pallas as pl
from jax.experimental.pallas import tpu as pltpu


def _round_up(x, m):
    return (x + m - 1) // m * m


def _linear_kernel(x_ref, w_ref, b_ref, o_ref, acc_ref):
    # x_ref: (TB, TK)  w_ref: (TK, Np)  b_ref: (1, Np)
    # o_ref: (TB, Np)  acc_ref: (TB, Np) f32 scratch
    k = pl.program_id(1)

    @pl.when(k == 0)
    def _():
        acc_ref[...] = jnp.zeros_like(acc_ref)

    acc_ref[...] += jnp.dot(x_ref[...], w_ref[...],
                            preferred_element_type=jnp.float32)

    @pl.when(k == pl.num_programs(1) - 1)
    def _():
        o_ref[...] = (acc_ref[...] + b_ref[...]).astype(o_ref.dtype)


def encoder_forward(x_nchw, weight_kn, bias_n, *, tile_b=None, tile_k=512):
    """Flatten(x) @ weight_kn + bias_n, matching nn.Flatten + nn.Linear."""
    B = x_nchw.shape[0]
    K, N = weight_kn.shape

    # Flatten NCHW -> (B, K), same row-major order as torch.Flatten.
    x2d = x_nchw.reshape(B, K)

    # Tile selection: sublane-aligned batch tile, lane-aligned K/N tiles.
    if tile_b is None:
        tile_b = min(128, _round_up(B, 8))
    B_pad = _round_up(B, tile_b)
    K_pad = _round_up(K, 128)
    tile_k = min(tile_k, K_pad)
    K_pad = _round_up(K_pad, tile_k)
    N_pad = _round_up(N, 128)          # lane-dense output store

    # Zero-padding: padded rows/cols contribute nothing to the matmul.
    x_p = jnp.zeros((B_pad, K_pad), x2d.dtype).at[:B, :K].set(x2d)
    w_p = jnp.zeros((K_pad, N_pad), weight_kn.dtype).at[:K, :N].set(weight_kn)
    b_p = jnp.zeros((1, N_pad), bias_n.dtype).at[0, :N].set(bias_n)

    grid = (B_pad // tile_b, K_pad // tile_k)   # K (reduction) axis last
    itemsize = jnp.dtype(x2d.dtype).itemsize

    out_p = pl.pallas_call(
        _linear_kernel,
        out_shape=jax.ShapeDtypeStruct((B_pad, N_pad), x2d.dtype),
        grid=grid,
        in_specs=[
            pl.BlockSpec((tile_b, tile_k), lambda i, k: (i, k)),
            pl.BlockSpec((tile_k, N_pad), lambda i, k: (k, 0)),
            pl.BlockSpec((1, N_pad), lambda i, k: (0, 0)),   # VMEM-resident bias
        ],
        out_specs=pl.BlockSpec((tile_b, N_pad), lambda i, k: (i, 0)),
        scratch_shapes=[pltpu.VMEM((tile_b, N_pad), jnp.float32)],
        compiler_params=pltpu.CompilerParams(
            dimension_semantics=("parallel", "arbitrary")),
        cost_estimate=pl.CostEstimate(
            flops=2 * B_pad * K_pad * N_pad,
            transcendentals=0,
            bytes_accessed=(x_p.size + w_p.size + b_p.size
                            + B_pad * N_pad) * itemsize),
    )(x_p, w_p, b_p)

    # Strip batch/lane padding back to the logical shape.
    return out_p[:B, :N]


if __name__ == "__main__":
    # Shapes implied by the module: x is (B, C, H, W), in_size = C*H*W.
    B, C, H, W = 2, 4, 16, 16
    in_size = C * H * W          # 1024
    out_size = 32

    key = jax.random.PRNGKey(0)
    kx, kw, kb = jax.random.split(key, 3)

    x = jax.random.normal(kx, (B, C, H, W), dtype=jnp.float32)

    # Deterministic init mimicking torch.nn.Linear defaults:
    # U(-1/sqrt(in_size), 1/sqrt(in_size)) for both weight and bias.
    bound = 1.0 / math.sqrt(in_size)
    # torch weight is (out_size, in_size); store transposed (in_size, out_size).
    weight_kn = jax.random.uniform(
        kw, (in_size, out_size), dtype=jnp.float32, minval=-bound, maxval=bound)
    bias_n = jax.random.uniform(
        kb, (out_size,), dtype=jnp.float32, minval=-bound, maxval=bound)

    fwd = jax.jit(encoder_forward)
    out = fwd(x, weight_kn, bias_n)
    jax.block_until_ready(out)

    # Reference check against plain JAX (same semantics as torch forward).
    ref = x.reshape(B, in_size) @ weight_kn + bias_n
    assert out.shape == (B, out_size)
    assert jnp.allclose(out, ref, atol=1e-4, rtol=1e-4)

    print("KERNEL_OK")
</pallas_src>

<mosaic_0001>
module attributes {stable_mosaic.version = 11 : i64} {
  func.func @_linear_kernel(%arg0: i32, %arg1: i32, %arg2: memref<8x512xf32, #tpu.memory_space<vmem>>, %arg3: memref<512x128xf32, #tpu.memory_space<vmem>>, %arg4: memref<1x128xf32, #tpu.memory_space<vmem>>, %arg5: memref<8x128xf32, #tpu.memory_space<vmem>>, %arg6: memref<8x128xf32, #tpu.memory_space<vmem>>) attributes {dimension_semantics = [#tpu.dimension_semantics<parallel>, #tpu.dimension_semantics<arbitrary>], iteration_bounds = array<i64: 1, 2>, scalar_prefetch = 0 : i64, scratch_operands = 1 : i64, tpu.core_type = #tpu.core_type<tc>, window_params = [{transform_indices = @transform_0, window_bounds = array<i64: 8, 512>}, {transform_indices = @transform_1, window_bounds = array<i64: 512, 128>}, {pipeline_mode = #tpu.pipeline_mode<synchronous>, transform_indices = @transform_2, window_bounds = array<i64: 1, 128>}, {transform_indices = @transform_3, window_bounds = array<i64: 8, 128>}]} {
    %c0_i32 = arith.constant 0 : i32
    %0 = arith.cmpi eq, %arg1, %c0_i32 : i32
    %1 = arith.extui %0 : i1 to i32
    %c0_i32_0 = arith.constant 0 : i32
    %2 = arith.cmpi ne, %1, %c0_i32_0 : i32
    scf.if %2 {
      %cst_9 = arith.constant 0.000000e+00 : f32
      %12 = vector.broadcast %cst_9 : f32 to vector<8x128xf32>
      %c0_10 = arith.constant 0 : index
      %c0_11 = arith.constant 0 : index
      %13 = vector.load %arg6[%c0_10, %c0_11] : memref<8x128xf32, #tpu.memory_space<vmem>>, vector<8x128xf32>
      tpu.vector_store %arg6[%c0_10, %c0_11], %12 {strides = array<i32>} : memref<8x128xf32, #tpu.memory_space<vmem>>, vector<8x128xf32>,
    } else {
    }
    %c0 = arith.constant 0 : index
    %c0_1 = arith.constant 0 : index
    %3 = vector.load %arg6[%c0, %c0_1] : memref<8x128xf32, #tpu.memory_space<vmem>>, vector<8x128xf32>
    %c0_2 = arith.constant 0 : index
    %c0_3 = arith.constant 0 : index
    %4 = vector.load %arg2[%c0_2, %c0_3] : memref<8x512xf32, #tpu.memory_space<vmem>>, vector<8x512xf32>
    %c0_4 = arith.constant 0 : index
    %c0_5 = arith.constant 0 : index
    %5 = vector.load %arg3[%c0_4, %c0_5] : memref<512x128xf32, #tpu.memory_space<vmem>>, vector<512x128xf32>
    %cst = arith.constant dense<0.000000e+00> : vector<8x128xf32>
    %6 = tpu.matmul %4, %5, %cst {dimension_numbers = #tpu.dot_dimension_numbers<[1], [0], [0], [1], [0, 0, 1, 1], [], []>} : vector<8x512xf32>, vector<512x128xf32>, vector<8x128xf32> -> vector<8x128xf32>
    %7 = arith.addf %3, %6 : vector<8x128xf32>
    %c0_6 = arith.constant 0 : index
    %c0_7 = arith.constant 0 : index
    %8 = vector.load %arg6[%c0_6, %c0_7] : memref<8x128xf32, #tpu.memory_space<vmem>>, vector<8x128xf32>
    tpu.vector_store %arg6[%c0_6, %c0_7], %7 {strides = array<i32>} : memref<8x128xf32, #tpu.memory_space<vmem>>, vector<8x128xf32>,
    %c1_i32 = arith.constant 1 : i32
    %9 = arith.cmpi eq, %arg1, %c1_i32 : i32
    %10 = arith.extui %9 : i1 to i32
    %c0_i32_8 = arith.constant 0 : i32
    %11 = arith.cmpi ne, %10, %c0_i32_8 : i32
    scf.if %11 {
      %c0_9 = arith.constant 0 : index
      %c0_10 = arith.constant 0 : index
      %12 = vector.load %arg6[%c0_9, %c0_10] : memref<8x128xf32, #tpu.memory_space<vmem>>, vector<8x128xf32>
      %c0_11 = arith.constant 0 : index
      %c0_12 = arith.constant 0 : index
      %13 = vector.load %arg4[%c0_11, %c0_12] : memref<1x128xf32, #tpu.memory_space<vmem>>, vector<1x128xf32>
      %14 = vector.broadcast %13 : vector<1x128xf32> to vector<8x128xf32>
      %15 = arith.addf %12, %14 : vector<8x128xf32>
      %c0_13 = arith.constant 0 : index
      %c0_14 = arith.constant 0 : index
      %16 = vector.load %arg5[%c0_13, %c0_14] : memref<8x128xf32, #tpu.memory_space<vmem>>, vector<8x128xf32>
      tpu.vector_store %arg5[%c0_13, %c0_14], %15 {strides = array<i32>} : memref<8x128xf32, #tpu.memory_space<vmem>>, vector<8x128xf32>,
    } else {
    }
    return
  }
  func.func @transform_0(%arg0: i32, %arg1: i32) -> (i32, i32) {
    %c0_i32 = arith.constant 0 : i32
    return %arg0, %arg1 : i32, i32
  }
  func.func @transform_1(%arg0: i32, %arg1: i32) -> (i32, i32) {
    %c0_i32 = arith.constant 0 : i32
    %c0_i32_0 = arith.constant 0 : i32
    return %arg1, %c0_i32 : i32, i32
  }
  func.func @transform_2(%arg0: i32, %arg1: i32) -> (i32, i32) {
    %c0_i32 = arith.constant 0 : i32
    %c0_i32_0 = arith.constant 0 : i32
    %c0_i32_1 = arith.constant 0 : i32
    return %c0_i32, %c0_i32_0 : i32, i32
  }
  func.func @transform_3(%arg0: i32, %arg1: i32) -> (i32, i32) {
    %c0_i32 = arith.constant 0 : i32
    %c0_i32_0 = arith.constant 0 : i32
    return %arg0, %c0_i32 : i32, i32
  }
}

</mosaic_0001>

<llo_original>
// kernel: encoder_forward.1
$region0: #{encoder_forward.1}
  #allocation0 [shape = 'u32[]', space=smem, size = 0x4, offset = 0x4, fixed_abs, tag = 'smem constant byte address 0x4 - core index']
  #allocation1 [shape = 'u32[144,128]{1,0:T(1,128)}', space=vmem, size = 0x12000, scoped, tag = 'internal scratch']
  #allocation2 [shape = 'f32[8,128]{1,0:T(8,128)}', space=vmem, size = 0x1000, scoped, tag = 'scratch operand']
  %s0 = inlined_call_operand.vmem [shape: f32[8,1024], index: 0, kind: input, shape index: {}]
  %s1 = inlined_call_operand.vmem [shape: f32[1024,128], index: 1, kind: input, shape index: {}]
  %s2 = inlined_call_operand.vmem [shape: f32[1,128], index: 2, kind: input, shape index: {}]
  %s3 = inlined_call_operand.vmem [shape: f32[8,128], index: 3, kind: output, shape index: {}]
  %s4 = sld [smem:[#allocation0]]
  $region53: #{encoder_forward.1} parent=0
    _
  %s6 = ssub.s32 1, %s4
  %s7 = scalar_select 0, %s6, %s4
  loop: start=0, step=1, limit=4
  $region2: #{encoder_forward.1} parent=0 // loop_pre_header
    _
  $region3: #{encoder_forward.1} parent=0 // loop_header
    %s9 = sphi 0, %s13
    %p10 = scmp.ge.s32.totalorder %s9, 4
    %s16 = sphi 0, %s28
    %s17 = sphi 0, %s24
    %s18 = sphi 0, %s16
    %s19 = sphi 0, %s17
    %s20 = sphi 0, %s18
    %s21 = sphi 0, %s19
    %s33 = sphi 0, %s35
    %s36 = sphi 0, %s33
    %s37 = sphi 0, %s36
    %s53 = sphi 0, %s37
    %s59 = sphi 0, %s61
    %s62 = sphi 0, %s59
    %s63 = sphi 0, %s62
    %s79 = sphi 0, %s63
    %s83 = sphi 0, %s83
    %s85 = sphi 0, %s83
    %s86 = sphi 0, %s85
    %s100 = sphi 0, %s86
    %s106 = sphi 0, %s108
    %s109 = sphi 0, %s106
    %s110 = sphi 0, %s109
    %s126 = sphi 0, %s110
  $region4: #{encoder_forward.1} parent=0 // loop_header_branch
    %12 = sbr.rel (%p10) target = $region8
  $region5: #{encoder_forward.1} parent=0 // loop_body
    %s14 = ssub.s32 %s9, 1
    %s15 = ssub.s32 %s9, 2
    %s22 = sadd.s32 1, %s17
    %p23 = scmp.ge.s32.totalorder %s22, 2
    %s24 = scalar_select %p23, 0, %s22
    %s25 = sadd.s32 1, %s16
    %s26 = scalar_select %p23, %s25, %s16
    %p27 = scmp.ge.s32.totalorder %s26, 1
    %s28 = scalar_select %p27, 0, %s26
    %s29 = ssub.s32 %s16, %s28
    %s30 = ssub.s32 %s17, %s24
    %s31 = sor.u32 %s29, %s30
    %p32 = scmp.eq.s32.totalorder %s31, 0
    %s34 = sadd.s32 %s33, 1
    %s35 = scalar_select %p32, %s33, %s34
    %p38 = pneg %p32
    %p39 = scmp.eq.s32.totalorder %s9, 1
    %p40 = por %p38, %p39
    %p41 = scmp.ne.s32.totalorder %s33, %s36
    %p42 = scmp.eq.s32.totalorder %s9, 0
    %p43 = por %p41, %p42
    %p44 = scmp.ne.s32.totalorder %s33, %s36
    %p45 = scmp.eq.s32.totalorder %s14, 1
    %p46 = por %p44, %p45
    %p47 = scmp.ne.s32.totalorder %s36, %s37
    %p48 = scmp.eq.s32.totalorder %s14, 0
    %p49 = por %p47, %p48
    %p50 = scmp.ne.s32.totalorder %s36, %s37
    %p51 = scmp.eq.s32.totalorder %s15, 1
    %p52 = por %p50, %p51
    %p54 = scmp.ne.s32.totalorder %s37, %s53
    %p55 = scmp.eq.s32.totalorder %s15, 0
    %p56 = por %p54, %p55
    %s57 = ssub.s32 %s17, %s24
    %p58 = scmp.eq.s32.totalorder %s57, 0
    %s60 = sadd.s32 %s59, 1
    %s61 = scalar_select %p58, %s59, %s60
    %p64 = pneg %p58
    %p65 = scmp.eq.s32.totalorder %s9, 1
    %p66 = por %p64, %p65
    %p67 = scmp.ne.s32.totalorder %s59, %s62
    %p68 = scmp.eq.s32.totalorder %s9, 0
    %p69 = por %p67, %p68
    %p70 = scmp.ne.s32.totalorder %s59, %s62
    %p71 = scmp.eq.s32.totalorder %s14, 1
    %p72 = por %p70, %p71
    %p73 = scmp.ne.s32.totalorder %s62, %s63
    %p74 = scmp.eq.s32.totalorder %s14, 0
    %p75 = por %p73, %p74
    %p76 = scmp.ne.s32.totalorder %s62, %s63
    %p77 = scmp.eq.s32.totalorder %s15, 1
    %p78 = por %p76, %p77
    %p80 = scmp.ne.s32.totalorder %s63, %s79
    %p81 = scmp.eq.s32.totalorder %s15, 0
    %p82 = por %p80, %p81
    %s84 = sadd.s32 %s83, 1
    %p87 = scmp.eq.s32.totalorder %s9, 1
    %p88 = scmp.ne.s32.totalorder %s83, %s85
    %p89 = scmp.eq.s32.totalorder %s9, 0
    %p90 = por %p88, %p89
    %p91 = scmp.ne.s32.totalorder %s83, %s85
    %p92 = scmp.eq.s32.totalorder %s14, 1
    %p93 = por %p91, %p92
    %p94 = scmp.ne.s32.totalorder %s85, %s86
    %p95 = scmp.eq.s32.totalorder %s14, 0
    %p96 = por %p94, %p95
    %p97 = scmp.ne.s32.totalorder %s85, %s86
    %p98 = scmp.eq.s32.totalorder %s15, 1
    %p99 = por %p97, %p98
    %p101 = scmp.ne.s32.totalorder %s86, %s100
    %p102 = scmp.eq.s32.totalorder %s15, 0
    %p103 = por %p101, %p102
    %s104 = ssub.s32 %s16, %s28
    %p105 = scmp.eq.s32.totalorder %s104, 0
    %s107 = sadd.s32 %s106, 1
    %s108 = scalar_select %p105, %s106, %s107
    %p111 = pneg %p105
    %p112 = scmp.eq.s32.totalorder %s9, 1
    %p113 = por %p111, %p112
    %p114 = scmp.ne.s32.totalorder %s106, %s109
    %p115 = scmp.eq.s32.totalorder %s9, 0
    %p116 = por %p114, %p115
    %p117 = scmp.ne.s32.totalorder %s106, %s109
    %p118 = scmp.eq.s32.totalorder %s14, 1
    %p119 = por %p117, %p118
    %p120 = scmp.ne.s32.totalorder %s109, %s110
    %p121 = scmp.eq.s32.totalorder %s14, 0
    %p122 = por %p120, %p121
    %p123 = scmp.ne.s32.totalorder %s109, %s110
    %p124 = scmp.eq.s32.totalorder %s15, 1
    %p125 = por %p123, %p124
    %p127 = scmp.ne.s32.totalorder %s110, %s126
    %p128 = scmp.eq.s32.totalorder %s15, 0
    %p129 = por %p127, %p128
    %p130 = scmp.le.s32.totalorder 1, %s9
    %p131 = scmp.lt.s32.totalorder %s9, 3
    %p132 = pnand %p130, %p131
    %p133 = pneg %p132
    // Predicated region
    $region9: #{encoder_forward.1} parent=5 // pred_check
      _
    $region10: #{encoder_forward.1} parent=5 // pred_check_branch
      %135 = sbr.rel (%p132) target = $region12
    $region11: #{encoder_forward.1} parent=5 // pred_region
      %s136 = ssub.s32 %s9, 1
      // Predicated region
      $region13: #{encoder_forward.1} parent=11 // pred_check
        %p137 = pneg %p96
      $region14: #{encoder_forward.1} parent=11 // pred_check_branch
        %139 = sbr.rel (%p137) target = $region16
      $region15: #{encoder_forward.1} parent=11 // pred_region
        _
      $region16: #{encoder_forward.1} parent=11 // pred_fallthru
        _
    $region12: #{encoder_forward.1} parent=5 // pred_fallthru
      _
    %p140 = scmp.lt.s32.totalorder %s9, 2
    // Predicated region
    $region17: #{encoder_forward.1} parent=5 // pred_check
      %p141 = pneg %p140
    $region18: #{encoder_forward.1} parent=5 // pred_check_branch
      %143 = sbr.rel (%p141) target = $region20
    $region19: #{encoder_forward.1} parent=5 // pred_region
      // Predicated region
      $region21: #{encoder_forward.1} parent=19 // pred_check
        %p144 = pneg %p43
      $region22: #{encoder_forward.1} parent=19 // pred_check_branch
        %146 = sbr.rel (%p144) target = $region24
      $region23: #{encoder_forward.1} parent=19 // pred_region
        %s147 = smul.u32 4, %s17
        %p148 = scmp.lt.s32.totalorder %s16, 0
        %s149 = scalar_select %p148, %s16, 0
        %p150 = scmp.lt.s32.totalorder %s147, 7
        %s151 = scalar_select %p150, %s147, 7
        %s152 = smul.addr %s149, 8
        %s153 = sadd.s32 %s151, %s152
        %s154 = smul.addr %s153, 8
        %s155 = scalar_lea.vmem %s0, %s154
        %s156 = smul.u32 4, %s17
      $region24: #{encoder_forward.1} parent=19 // pred_fallthru
        _
      // Predicated region
      $region25: #{encoder_forward.1} parent=19 // pred_check
        %p157 = pneg %p69
      $region26: #{encoder_forward.1} parent=19 // pred_check_branch
        %159 = sbr.rel (%p157) target = $region28
      $region27: #{encoder_forward.1} parent=19 // pred_region
        %s160 = smul.u32 64, %s17
        %p161 = scmp.lt.s32.totalorder %s160, 127
        %s162 = scalar_select %p161, %s160, 127
        %s163 = smul.addr %s162, 8
        %s164 = scalar_lea.vmem %s1, %s163
        %s165 = smul.u32 64, %s17
      $region28: #{encoder_forward.1} parent=19 // pred_fallthru
        _
    $region20: #{encoder_forward.1} parent=5 // pred_fallthru
      _
    %p166 = scmp.le.s32.totalorder 1, %s9
    %p167 = scmp.lt.s32.totalorder %s9, 3
    %p168 = pnand %p166, %p167
    %p169 = pneg %p168
    // Predicated region
    $region29: #{encoder_forward.1} parent=5 // pred_check
      _
    $region30: #{encoder_forward.1} parent=5 // pred_check_branch
      %171 = sbr.rel (%p168) target = $region32
    $region31: #{encoder_forward.1} parent=5 // pred_region
      %s172 = ssub.s32 %s9, 1
      %s173 = smul.u32 4, %s19
      %p174 = scmp.lt.s32.totalorder %s18, 0
      %s175 = scalar_select %p174, %s18, 0
      %p176 = scmp.lt.s32.totalorder %s173, 7
      %s177 = scalar_select %p176, %s173, 7
      %s178 = smul.addr %s175, 8
      %s179 = sadd.s32 %s177, %s178
      %s180 = smul.addr %s179, 8
      %s181 = scalar_lea.vmem %s0, %s180
      %p182 = pneg %p49
      %p183 = pneg %p46
      %s184 = smul.u32 64, %s19
      %p185 = scmp.lt.s32.totalorder %s184, 127
      %s186 = scalar_select %p185, %s184, 127
      %s187 = smul.addr %s186, 8
      %s188 = scalar_lea.vmem %s1, %s187
      %p189 = pneg %p75
      %p190 = pneg %p72
      %p191 = pneg %p96
      %p192 = pneg %p93
      %p193 = pneg %p122
      %p194 = pneg %p119
      %p195 = scmp.lt.s32.totalorder %s18, 0
      %s196 = scalar_select %p195, %s18, 0
      %s197 = smul.addr %s196, 8
      %s198 = scalar_lea.vmem %s3, %s197
      %s199 = smul.u32 4, %s19
      %p200 = scmp.lt.s32.totalorder %s18, 0
      %s201 = scalar_select %p200, %s18, 0
      %p202 = scmp.lt.s32.totalorder %s199, 7
      %s203 = scalar_select %p202, %s199, 7
      %s204 = smul.addr %s201, 8
      %s205 = sadd.s32 %s203, %s204
      %s206 = smul.addr %s205, 8
      %s207 = scalar_lea.vmem %s0, %s206
      %s208 = smul.u32 4, %s19
      %s209 = smul.u32 64, %s19
      %p210 = scmp.lt.s32.totalorder %s209, 127
      %s211 = scalar_select %p210, %s209, 127
      %s212 = smul.addr %s211, 8
      %s213 = scalar_lea.vmem %s1, %s212
      %s214 = smul.u32 64, %s19
      %p215 = scmp.lt.s32.totalorder %s18, 0
      %s216 = scalar_select %p215, %s18, 0
      %s217 = smul.addr %s216, 8
      %s218 = scalar_lea.vmem %s3, %s217
      %p219 = scmp.eq.s32.totalorder %s19, 0
      // Predicated region
      $region33: #{encoder_forward.1} parent=31 // pred_check
        %p220 = pneg %p219
      $region34: #{encoder_forward.1} parent=31 // pred_check_branch
        %222 = sbr.rel (%p220) target = $region36
      $region35: #{encoder_forward.1} parent=31 // pred_region
        %223 = vst [vmem:[#allocation2] sm:$0xff] 0.0
      $region36: #{encoder_forward.1} parent=31 // pred_fallthru
        _
      %v224 = vld [vmem:[#allocation2] sm:$0xff]
      %v225 = vld [vmem:[%s207] sm:$0xff]
      %v226 = vld [vmem:[%s207 + $0x8] sm:$0xff]
      %v227 = vld [vmem:[%s207 + $0x10] sm:$0xff]
      %v228 = vld [vmem:[%s207 + $0x18] sm:$0xff]
      %v229 = vld [vmem:[%s213] sm:$0xff]
      %v230 = vld [vmem:[%s213 + $0x8] sm:$0xff]
      %v231 = vld [vmem:[%s213 + $0x10] sm:$0xff]
      %v232 = vld [vmem:[%s213 + $0x18] sm:$0xff]
      %v233 = vld [vmem:[%s213 + $0x20] sm:$0xff]
      %v234 = vld [vmem:[%s213 + $0x28] sm:$0xff]
      %v235 = vld [vmem:[%s213 + $0x30] sm:$0xff]
      %v236 = vld [vmem:[%s213 + $0x38] sm:$0xff]
      %v237 = vld [vmem:[%s213 + $0x40] sm:$0xff]
      %v238 = vld [vmem:[%s213 + $0x48] sm:$0xff]
      %v239 = vld [vmem:[%s213 + $0x50] sm:$0xff]
      %v240 = vld [vmem:[%s213 + $0x58] sm:$0xff]
      %v241 = vld [vmem:[%s213 + $0x60] sm:$0xff]
      %v242 = vld [vmem:[%s213 + $0x68] sm:$0xff]
      %v243 = vld [vmem:[%s213 + $0x70] sm:$0xff]
      %v244 = vld [vmem:[%s213 + $0x78] sm:$0xff]
      %v245 = vld [vmem:[%s213 + $0x80] sm:$0xff]
      %v246 = vld [vmem:[%s213 + $0x88] sm:$0xff]
      %v247 = vld [vmem:[%s213 + $0x90] sm:$0xff]
      %v248 = vld [vmem:[%s213 + $0x98] sm:$0xff]
      %v249 = vld [vmem:[%s213 + $0xa0] sm:$0xff]
      %v250 = vld [vmem:[%s213 + $0xa8] sm:$0xff]
      %v251 = vld [vmem:[%s213 + $0xb0] sm:$0xff]
      %v252 = vld [vmem:[%s213 + $0xb8] sm:$0xff]
      %v253 = vld [vmem:[%s213 + $0xc0] sm:$0xff]
      %v254 = vld [vmem:[%s213 + $0xc8] sm:$0xff]
      %v255 = vld [vmem:[%s213 + $0xd0] sm:$0xff]
      %v256 = vld [vmem:[%s213 + $0xd8] sm:$0xff]
      %v257 = vld [vmem:[%s213 + $0xe0] sm:$0xff]
      %v258 = vld [vmem:[%s213 + $0xe8] sm:$0xff]
      %v259 = vld [vmem:[%s213 + $0xf0] sm:$0xff]
      %v260 = vld [vmem:[%s213 + $0xf8] sm:$0xff]
      %v261 = vld [vmem:[%s213 + $0x100] sm:$0xff]
      %v262 = vld [vmem:[%s213 + $0x108] sm:$0xff]
      %v263 = vld [vmem:[%s213 + $0x110] sm:$0xff]
      %v264 = vld [vmem:[%s213 + $0x118] sm:$0xff]
      %v265 = vld [vmem:[%s213 + $0x120] sm:$0xff]
      %v266 = vld [vmem:[%s213 + $0x128] sm:$0xff]
      %v267 = vld [vmem:[%s213 + $0x130] sm:$0xff]
      %v268 = vld [vmem:[%s213 + $0x138] sm:$0xff]
      %v269 = vld [vmem:[%s213 + $0x140] sm:$0xff]
      %v270 = vld [vmem:[%s213 + $0x148] sm:$0xff]
      %v271 = vld [vmem:[%s213 + $0x150] sm:$0xff]
      %v272 = vld [vmem:[%s213 + $0x158] sm:$0xff]
      %v273 = vld [vmem:[%s213 + $0x160] sm:$0xff]
      %v274 = vld [vmem:[%s213 + $0x168] sm:$0xff]
      %v275 = vld [vmem:[%s213 + $0x170] sm:$0xff]
      %v276 = vld [vmem:[%s213 + $0x178] sm:$0xff]
      %v277 = vld [vmem:[%s213 + $0x180] sm:$0xff]
      %v278 = vld [vmem:[%s213 + $0x188] sm:$0xff]
      %v279 = vld [vmem:[%s213 + $0x190] sm:$0xff]
      %v280 = vld [vmem:[%s213 + $0x198] sm:$0xff]
      %v281 = vld [vmem:[%s213 + $0x1a0] sm:$0xff]
      %v282 = vld [vmem:[%s213 + $0x1a8] sm:$0xff]
      %v283 = vld [vmem:[%s213 + $0x1b0] sm:$0xff]
      %v284 = vld [vmem:[%s213 + $0x1b8] sm:$0xff]
      %v285 = vld [vmem:[%s213 + $0x1c0] sm:$0xff]
      %v286 = vld [vmem:[%s213 + $0x1c8] sm:$0xff]
      %v287 = vld [vmem:[%s213 + $0x1d0] sm:$0xff]
      %v288 = vld [vmem:[%s213 + $0x1d8] sm:$0xff]
      %v289 = vld [vmem:[%s213 + $0x1e0] sm:$0xff]
      %v290 = vld [vmem:[%s213 + $0x1e8] sm:$0xff]
      %v291 = vld [vmem:[%s213 + $0x1f0] sm:$0xff]
      %v292 = vld [vmem:[%s213 + $0x1f8] sm:$0xff]
      %293 = vmatprep.subr.mxu0 0.0
      %294 = vmatpush1.msra.mxu0 %v229
      %295 = vmatprep.subr.mxu0 0.0
      %296 = vmatpush1.msra.mxu0 %v230
      %297 = vmatprep.subr.mxu0 0.0
      %298 = vmatpush1.msra.mxu0 %v231
      %299 = vmatprep.subr.mxu0 0.0
      %300 = vmatpush1.msra.mxu0 %v232
      %301 = vmatprep.subr.mxu0 0.0
      %302 = vmatpush1.msra.mxu0 %v233
      %303 = vmatprep.subr.mxu0 0.0
      %304 = vmatpush1.msra.mxu0 %v234
      %305 = vmatprep.subr.mxu0 0.0
      %306 = vmatpush1.msra.mxu0 %v235
      %307 = vmatprep.subr.mxu0 0.0
      %308 = vmatpush1.msra.mxu0 %v236
      %309 = vmatprep.subr.mxu0 0.0
      %310 = vmatpush1.msra.mxu0 %v237
      %311 = vmatprep.subr.mxu0 0.0
      %312 = vmatpush1.msra.mxu0 %v238
      %313 = vmatprep.subr.mxu0 0.0
      %314 = vmatpush1.msra.mxu0 %v239
      %315 = vmatprep.subr.mxu0 0.0
      %316 = vmatpush1.msra.mxu0 %v240
      %317 = vmatprep.subr.mxu0 0.0
      %318 = vmatpush1.msra.mxu0 %v241
      %319 = vmatprep.subr.mxu0 0.0
      %320 = vmatpush1.msra.mxu0 %v242
      %321 = vmatprep.subr.mxu0 0.0
      %322 = vmatpush1.msra.mxu0 %v243
      %323 = vmatprep.subr.mxu0 0.0
      %324 = vmatpush1.msra.mxu0 %v244
      %325 = vmatprep.subr.mxu0 0.0
      %326 = vmatpush1.msra.mxu0 %v245
      %327 = vmatprep.subr.mxu0 0.0
      %328 = vmatpush1.msra.mxu0 %v246
      %329 = vmatprep.subr.mxu0 0.0
      %330 = vmatpush1.msra.mxu0 %v247
      %331 = vmatprep.subr.mxu0 0.0
      %332 = vmatpush1.msra.mxu0 %v248
      %333 = vmatprep.subr.mxu0 0.0
      %334 = vmatpush1.msra.mxu0 %v249
      %335 = vmatprep.subr.mxu0 0.0
      %336 = vmatpush1.msra.mxu0 %v250
      %337 = vmatprep.subr.mxu0 0.0
      %338 = vmatpush1.msra.mxu0 %v251
      %339 = vmatprep.subr.mxu0 0.0
      %340 = vmatpush1.msra.mxu0 %v252
      %341 = vmatprep.subr.mxu0 0.0
      %342 = vmatpush1.msra.mxu0 %v253
      %343 = vmatprep.subr.mxu0 0.0
      %344 = vmatpush1.msra.mxu0 %v254
      %345 = vmatprep.subr.mxu0 0.0
      %346 = vmatpush1.msra.mxu0 %v255
      %347 = vmatprep.subr.mxu0 0.0
      %348 = vmatpush1.msra.mxu0 %v256
      %349 = vmatprep.subr.mxu0 0.0
      %350 = vmatpush1.msra.mxu0 %v257
      %351 = vmatprep.subr.mxu0 0.0
      %352 = vmatpush1.msra.mxu0 %v258
      %353 = vmatprep.subr.mxu0 0.0
      %354 = vmatpush1.msra.mxu0 %v259
      %355 = vmatprep.subr.mxu0 0.0
      %356 = vmatpush1.msra.mxu0 %v260
      %357 = vmatprep.mubr.f32.mxu0 %v226
      %358 = vmatmul.mubr.f32.gmra.mrb[0].mxu0 %v225
      %v359 = vpop.f32.mrb[0].mxu0
      %v360 = vadd.f32 0.0, %v359
      %v361 = vpop.f32.mrb[0].mxu0
      %362 = vdwg.mxu0
      %363 = vmatprep.subr.mxu0 0.0
      %364 = vmatpush1.msra.mxu0 %v261
      %365 = vmatprep.subr.mxu0 0.0
      %366 = vmatpush1.msra.mxu0 %v262
      %367 = vmatprep.subr.mxu0 0.0
      %368 = vmatpush1.msra.mxu0 %v263
      %369 = vmatprep.subr.mxu0 0.0
      %370 = vmatpush1.msra.mxu0 %v264
      %371 = vmatprep.subr.mxu0 0.0
      %372 = vmatpush1.msra.mxu0 %v265
      %373 = vmatprep.subr.mxu0 0.0
      %374 = vmatpush1.msra.mxu0 %v266
      %375 = vmatprep.subr.mxu0 0.0
      %376 = vmatpush1.msra.mxu0 %v267
      %377 = vmatprep.subr.mxu0 0.0
      %378 = vmatpush1.msra.mxu0 %v268
      %379 = vmatprep.subr.mxu0 0.0
      %380 = vmatpush1.msra.mxu0 %v269
      %381 = vmatprep.subr.mxu0 0.0
      %382 = vmatpush1.msra.mxu0 %v270
      %383 = vmatprep.subr.mxu0 0.0
      %384 = vmatpush1.msra.mxu0 %v271
      %385 = vmatprep.subr.mxu0 0.0
      %386 = vmatpush1.msra.mxu0 %v272
      %387 = vmatprep.subr.mxu0 0.0
      %388 = vmatpush1.msra.mxu0 %v273
      %389 = vmatprep.subr.mxu0 0.0
      %390 = vmatpush1.msra.mxu0 %v274
      %391 = vmatprep.subr.mxu0 0.0
      %392 = vmatpush1.msra.mxu0 %v275
      %393 = vmatprep.subr.mxu0 0.0
      %394 = vmatpush1.msra.mxu0 %v276
      %395 = vmatprep.subr.mxu0 0.0
      %396 = vmatpush1.msra.mxu0 %v277
      %397 = vmatprep.subr.mxu0 0.0
      %398 = vmatpush1.msra.mxu0 %v278
      %399 = vmatprep.subr.mxu0 0.0
      %400 = vmatpush1.msra.mxu0 %v279
      %401 = vmatprep.subr.mxu0 0.0
      %402 = vmatpush1.msra.mxu0 %v280
      %403 = vmatprep.subr.mxu0 0.0
      %404 = vmatpush1.msra.mxu0 %v281
      %405 = vmatprep.subr.mxu0 0.0
      %406 = vmatpush1.msra.mxu0 %v282
      %407 = vmatprep.subr.mxu0 0.0
      %408 = vmatpush1.msra.mxu0 %v283
      %409 = vmatprep.subr.mxu0 0.0
      %410 = vmatpush1.msra.mxu0 %v284
      %411 = vmatprep.subr.mxu0 0.0
      %412 = vmatpush1.msra.mxu0 %v285
      %413 = vmatprep.subr.mxu0 0.0
      %414 = vmatpush1.msra.mxu0 %v286
      %415 = vmatprep.subr.mxu0 0.0
      %416 = vmatpush1.msra.mxu0 %v287
      %417 = vmatprep.subr.mxu0 0.0
      %418 = vmatpush1.msra.mxu0 %v288
      %419 = vmatprep.subr.mxu0 0.0
      %420 = vmatpush1.msra.mxu0 %v289
      %421 = vmatprep.subr.mxu0 0.0
      %422 = vmatpush1.msra.mxu0 %v290
      %423 = vmatprep.subr.mxu0 0.0
      %424 = vmatpush1.msra.mxu0 %v291
      %425 = vmatprep.subr.mxu0 0.0
      %426 = vmatpush1.msra.mxu0 %v292
      %427 = vmatprep.mubr.f32.mxu0 %v228
      %428 = vmatmul.mubr.f32.gmra.mrb[0].mxu0 %v227
      %v429 = vpop.f32.mrb[0].mxu0
      %v430 = vadd.f32 %v360, %v429
      %v431 = vpop.f32.mrb[0].mxu0
      %432 = vdwg.mxu0
      %v433 = vadd.f32 %v224, %v430
      %434 = vst [vmem:[#allocation2] sm:$0xff] %v433
      %p435 = scmp.eq.s32.totalorder %s19, 1
      // Predicated region
      $region37: #{encoder_forward.1} parent=31 // pred_check
        %p436 = pneg %p435
      $region38: #{encoder_forward.1} parent=31 // pred_check_branch
        %438 = sbr.rel (%p436) target = $region40
      $region39: #{encoder_forward.1} parent=31 // pred_region
        %v439 = vld [vmem:[#allocation2] sm:$0xff]
        %v440 = vld [vmem:[%s2] sm:$0x1]
        %v442 = vlaneseq
        %v443 = vshrl.u32 %v442, 7
        %v444 = vsub.s32 0, %v443
        %v445 = vrot.slane %v440, %v444
        %v447 = vadd.f32 %v439, %v445
        %448 = vst [vmem:[%s218] sm:$0xff] %v447
      $region40: #{encoder_forward.1} parent=31 // pred_fallthru
        _
      %p449 = scmp.lt.s32.totalorder %s18, 0
      %s450 = scalar_select %p449, %s18, 0
      %s451 = smul.addr %s450, 8
      %s452 = scalar_lea.vmem %s3, %s451
      // Predicated region
      $region41: #{encoder_forward.1} parent=31 // pred_check
        %p453 = pneg %p119
      $region42: #{encoder_forward.1} parent=31 // pred_check_branch
        %455 = sbr.rel (%p453) target = $region44
      $region43: #{encoder_forward.1} parent=31 // pred_region
        _
      $region44: #{encoder_forward.1} parent=31 // pred_fallthru
        _
      // Predicated region
      $region45: #{encoder_forward.1} parent=31 // pred_check
        %p456 = pneg %p119
      $region46: #{encoder_forward.1} parent=31 // pred_check_branch
        %458 = sbr.rel (%p456) target = $region48
      $region47: #{encoder_forward.1} parent=31 // pred_region
        %p459 = scmp.lt.s32.totalorder %s18, 0
        %s460 = scalar_select %p459, %s18, 0
        %s461 = smul.addr %s460, 8
        %s462 = scalar_lea.vmem %s3, %s461
      $region48: #{encoder_forward.1} parent=31 // pred_fallthru
        _
    $region32: #{encoder_forward.1} parent=5 // pred_fallthru
      _
    %p463 = scmp.le.s32.totalorder 2, %s9
    // Predicated region
    $region49: #{encoder_forward.1} parent=5 // pred_check
      %p464 = pneg %p463
    $region50: #{encoder_forward.1} parent=5 // pred_check_branch
      %466 = sbr.rel (%p464) target = $region52
    $region51: #{encoder_forward.1} parent=5 // pred_region
      %s467 = ssub.s32 %s9, 2
    $region52: #{encoder_forward.1} parent=5 // pred_fallthru
      _
  $region6: #{encoder_forward.1} parent=0 // loop_footer
    %s13 = sadd.s32 1, %s9
  $region7: #{encoder_forward.1} parent=0 // loop_footer_branch
    %8 = sbr.rel target = $region3
  $region8: #{encoder_forward.1} parent=0 // loop_exit
    _

</llo_original>
